<compile_context>
chip_gen: v6e
topology: v6e:2x2x1
jax: 0.10.0
libtpu: 0.0.40
codegen_flags: <defaults>
</compile_context>

<pallas_src>
import functools
from typing import NamedTuple

import jax
import jax.numpy as jnp
from jax.experimental import pallas as pl
from jax.experimental.pallas import tpu as pltpu


class SlabLayout(NamedTuple):
    n: int          # logical number of particles N
    lanes: int      # lane (last) dimension, multiple of 128
    rows_pad: int   # padded row count, == grid * tile_rows
    tile_rows: int  # rows per grid step, multiple of 8
    grid: int       # number of grid steps


def _choose_layout(N, *, lanes=512, max_tile_rows=1024, min_grid=8):
    """Dense (rows_pad, lanes) slab layout with (8,128)-aligned tiles.

    - per-array tile capped at max_tile_rows*lanes*4 B (~2 MiB default), so
      double-buffered (in 2x + out 1x) VMEM stays ~12 MiB (fits v5e default).
    - aims for >= min_grid steps when data allows (v7x 2-TC sharding).
    - rows_pad over-allocates at most grid*8 - 1 rows (bounded padding waste).
    """
    rows = pl.cdiv(N, lanes)
    rows8 = pl.cdiv(rows, 8) * 8
    grid = max(pl.cdiv(rows8, max_tile_rows), min(min_grid, rows8 // 8), 1)
    tile_rows = pl.cdiv(pl.cdiv(rows8, grid), 8) * 8
    rows_pad = grid * tile_rows
    return SlabLayout(n=N, lanes=lanes, rows_pad=rows_pad,
                      tile_rows=tile_rows, grid=grid)


def _rosenbrock_kernel(x_ref, o_ref, *, a, b, shift):
    # x_ref: (2, TILE_R, LANES) f32, o_ref: (TILE_R, LANES) f32 in VMEM.
    x0 = x_ref[0]
    x1 = x_ref[1]
    if shift != 0.0:  # static Python float -> folded away at trace time
        x0 = x0 - shift
        x1 = x1 - shift
    d = x1 - x0 * x0
    e = a - x0
    o_ref[...] = e * e + b * (d * d)


def init_rosenbrock_params(key, N, m, upper, lower, init_noise, *, lanes=512):
    """Parameter init mirroring PEDS_Model.__init__ (rv=False).

    Returns (x_slab, layout) where x_slab is a padded (2, rows_pad, lanes)
    float32 slab.  The pad/reshape cost is paid exactly once here, never in
    the forward pass.
    """
    assert m == 2, "Rosenbrock requires m == 2"
    layout = _choose_layout(N, lanes=lanes)
    k_center, k_noise = jax.random.split(key)
    center = lower + jax.random.uniform(k_center, (m,), dtype=jnp.float32) * (upper - lower)
    noise = jax.random.normal(k_noise, (m, N), dtype=jnp.float32) * init_noise
    x = center[:, None] + noise  # (2, N) logical parameters
    n_pad = layout.rows_pad * layout.lanes
    slab = jnp.zeros((2, n_pad), jnp.float32).at[:, :N].set(x)
    slab = slab.reshape(2, layout.rows_pad, layout.lanes)
    # TODO(synk): optional bf16 storage (halves input HBM bytes) once numerics
    # with b=100 are validated; f32 kept here for exact parity with PyTorch.
    return slab, layout


def rosenbrock_forward(x_slab, layout, *, a=1.0, b=100.0, shift=0.0,
                       force_kernel=False):
    """Forward on the padded slab.  Returns the padded (rows_pad, lanes) slab.

    Consumers should keep the slab layout; use `output_to_flat` to pull out
    the logical (N,) view when needed (validation, logging).
    """
    two, rows_pad, lanes = x_slab.shape
    assert two == 2
    assert rows_pad == layout.rows_pad and lanes == layout.lanes
    n_pad = rows_pad * lanes

    if not force_kernel and n_pad < 64 * 1024:
        # Tiny problems: fused XLA elementwise beats the fixed kernel launch cost.
        x0 = x_slab[0] - shift
        x1 = x_slab[1] - shift
        return (a - x0) ** 2 + b * (x1 - x0 * x0) ** 2

    kernel = functools.partial(
        _rosenbrock_kernel, a=float(a), b=float(b), shift=float(shift)
    )
    flops_per_elem = 7 + (2 if shift != 0.0 else 0)
    cost = pl.CostEstimate(
        flops=flops_per_elem * n_pad,
        transcendentals=0,
        bytes_accessed=12 * n_pad,  # 2 f32 reads + 1 f32 write per element
    )

    return pl.pallas_call(
        kernel,
        out_shape=jax.ShapeDtypeStruct((rows_pad, lanes), jnp.float32),
        grid=(layout.grid,),
        in_specs=[
            # Single contiguous tile carrying both coordinates -> one input
            # DMA stream per grid step.
            pl.BlockSpec((2, layout.tile_rows, lanes), lambda i: (0, i, 0)),
        ],
        out_specs=pl.BlockSpec((layout.tile_rows, lanes), lambda i: (i, 0)),
        compiler_params=pltpu.CompilerParams(
            dimension_semantics=("parallel",),
        ),
        cost_estimate=cost,
    )(x_slab)


def output_to_flat(out_slab, layout):
    """Extract the logical (N,) result from the padded slab (validation only)."""
    return out_slab.reshape(layout.rows_pad * layout.lanes)[: layout.n]


if __name__ == "__main__":
    # Small shapes consistent with the module: N particles, m = 2 dims.
    N, m = 1024, 2
    upper, lower = 2.0, -2.0
    init_noise = 0.5
    shift = 0.0
    a, b = 1.0, 100.0

    key = jax.random.PRNGKey(0)
    x_slab, layout = init_rosenbrock_params(key, N, m, upper, lower, init_noise)

    out_slab = rosenbrock_forward(
        x_slab, layout, a=a, b=b, shift=shift, force_kernel=True
    )
    out_slab = jax.block_until_ready(out_slab)
    out = output_to_flat(out_slab, layout)

    # Pure-JAX reference on the logical (N, 2) view.
    x_flat = x_slab.reshape(2, -1)[:, :N]
    xs = x_flat.T - shift
    ref = (a - xs[:, 0]) ** 2 + b * (xs[:, 1] - xs[:, 0] ** 2) ** 2

    assert out.shape == (N,)
    assert jnp.allclose(out, ref, rtol=1e-5, atol=1e-5), (out[:8], ref[:8])

    print("KERNEL_OK")
</pallas_src>

<mosaic_0001>
module attributes {stable_mosaic.version = 11 : i64} {
  func.func @_rosenbrock_kernel(%arg0: i32, %arg1: memref<2x8x512xf32, #tpu.memory_space<vmem>>, %arg2: memref<8x512xf32, #tpu.memory_space<vmem>>) attributes {dimension_semantics = [#tpu.dimension_semantics<parallel>], iteration_bounds = array<i64: 1>, scalar_prefetch = 0 : i64, scratch_operands = 0 : i64, tpu.core_type = #tpu.core_type<tc>, window_params = [{transform_indices = @transform_0, window_bounds = array<i64: 2, 8, 512>}, {transform_indices = @transform_1, window_bounds = array<i64: 8, 512>}]} {
    %c0 = arith.constant 0 : index
    %c0_0 = arith.constant 0 : index
    %c0_1 = arith.constant 0 : index
    %0 = vector.load %arg1[%c0, %c0_0, %c0_1] : memref<2x8x512xf32, #tpu.memory_space<vmem>>, vector<1x8x512xf32>
    %1 = vector.shape_cast %0 : vector<1x8x512xf32> to vector<8x512xf32>
    %c1 = arith.constant 1 : index
    %c0_2 = arith.constant 0 : index
    %c0_3 = arith.constant 0 : index
    %2 = vector.load %arg1[%c1, %c0_2, %c0_3] : memref<2x8x512xf32, #tpu.memory_space<vmem>>, vector<1x8x512xf32>
    %3 = vector.shape_cast %2 : vector<1x8x512xf32> to vector<8x512xf32>
    %4 = arith.mulf %1, %1 : vector<8x512xf32>
    %5 = arith.subf %3, %4 : vector<8x512xf32>
    %cst = arith.constant 1.000000e+00 : f32
    %6 = vector.broadcast %cst : f32 to vector<8x512xf32>
    %7 = arith.subf %6, %1 : vector<8x512xf32>
    %8 = arith.mulf %7, %7 : vector<8x512xf32>
    %9 = arith.mulf %5, %5 : vector<8x512xf32>
    %cst_4 = arith.constant 1.000000e+02 : f32
    %10 = vector.broadcast %cst_4 : f32 to vector<8x512xf32>
    %11 = arith.mulf %10, %9 : vector<8x512xf32>
    %12 = arith.addf %8, %11 : vector<8x512xf32>
    %c0_5 = arith.constant 0 : index
    %c0_6 = arith.constant 0 : index
    %13 = vector.load %arg2[%c0_5, %c0_6] : memref<8x512xf32, #tpu.memory_space<vmem>>, vector<8x512xf32>
    tpu.vector_store %arg2[%c0_5, %c0_6], %12 {strides = array<i32>} : memref<8x512xf32, #tpu.memory_space<vmem>>, vector<8x512xf32>,
    return
  }
  func.func @transform_0(%arg0: i32) -> (i32, i32, i32) {
    %c0_i32 = arith.constant 0 : i32
    %c0_i32_0 = arith.constant 0 : i32
    %c0_i32_1 = arith.constant 0 : i32
    return %c0_i32, %arg0, %c0_i32_0 : i32, i32, i32
  }
  func.func @transform_1(%arg0: i32) -> (i32, i32) {
    %c0_i32 = arith.constant 0 : i32
    %c0_i32_0 = arith.constant 0 : i32
    return %arg0, %c0_i32 : i32, i32
  }
}

</mosaic_0001>

<llo_original>
// kernel: tpu_custom_call.1
$region0: #{tpu_custom_call.1}
  #allocation0 [shape = 'u32[]', space=smem, size = 0x4, offset = 0x4, fixed_abs, tag = 'smem constant byte address 0x4 - core index']
  #allocation1 [shape = 'u32[144,128]{1,0:T(1,128)}', space=vmem, size = 0x12000, scoped, tag = 'internal scratch']
  %s0 = inlined_call_operand.hbm [shape: f32[2,8,512], index: 0, kind: input, shape index: {}]
  %s1 = inlined_call_operand.hbm [shape: f32[8,512], index: 1, kind: output, shape index: {}]
  %s2 = sld [smem:[#allocation0]]
  $region18: #{tpu_custom_call.1} parent=0
    _
  %s4 = ssub.s32 1, %s2
  %s5 = scalar_select 0, %s4, %s2
  $region1: #{tpu_custom_call.1} parent=0
    #allocation2 [shape = 'u8[32768]{0}', space=vmem, size = 0x8000, scoped, tag = 'input window, operand 0, single buffered']
    #allocation3 [shape = 's32[1]{0}', space=sflag, size = 0x4, scoped, tag = 'scoped memory for tpu_custom_call.1']
    #allocation4 [shape = 's32[1]{0}', space=sflag, size = 0x4, scoped, tag = 'scoped memory for tpu_custom_call.1']
    #allocation5 [shape = 'u8[16384]{0}', space=vmem, size = 0x4000, scoped, tag = 'output window, operand 0, single buffered']
    %6 = vsyncpa [#allocation3], 0
    %7 = vsyncpa [#allocation4], 0
    // Predicated region
    $region2: #{tpu_custom_call.1} parent=1 // pred_check
      _
    $region3: #{tpu_custom_call.1} parent=1 // pred_check_branch
      %9 = sbr.rel (0) target = $region5
    $region4: #{tpu_custom_call.1} parent=1 // pred_region
      %s11 = ssub.s32 1024, 1024
      %12 = vsyncadd [#allocation3], %s11
      %s13 = sshll.u32 [#allocation2], 4
      %s14 = int_to_ptr.vmem [resolvable:$true] %s13
      %19 = dma.hbm_to_vmem [thread:$0]  %s0, 1024, %s14, [#allocation3], 512, 512, 32
    $region5: #{tpu_custom_call.1} parent=1 // pred_fallthru
      _
    // Predicated region
    $region6: #{tpu_custom_call.1} parent=1 // pred_check
      _
    $region7: #{tpu_custom_call.1} parent=1 // pred_check_branch
      %21 = sbr.rel (0) target = $region9
    $region8: #{tpu_custom_call.1} parent=1 // pred_region
      %22 = dma.done [#allocation3], 1024
    $region9: #{tpu_custom_call.1} parent=1 // pred_fallthru
      _
    %v23 = vld [vmem:[#allocation2] sm:$0xff]
    %v24 = vld [vmem:[#allocation2 + $0x8] sm:$0xff]
    %v25 = vld [vmem:[#allocation2 + $0x10] sm:$0xff]
    %v26 = vld [vmem:[#allocation2 + $0x18] sm:$0xff]
    %s27 = scalar_lea.vmem [#allocation2], 32
    %v28 = vld [vmem:[%s27] sm:$0xff]
    %v29 = vld [vmem:[%s27 + $0x8] sm:$0xff]
    %v30 = vld [vmem:[%s27 + $0x10] sm:$0xff]
    %v31 = vld [vmem:[%s27 + $0x18] sm:$0xff]
    %v32 = vmul.f32 %v23, %v23
    %v33 = vmul.f32 %v24, %v24
    %v34 = vmul.f32 %v25, %v25
    %v35 = vmul.f32 %v26, %v26
    %v36 = vsub.f32 %v28, %v32
    %v37 = vsub.f32 %v29, %v33
    %v38 = vsub.f32 %v30, %v34
    %v39 = vsub.f32 %v31, %v35
    %v40 = vsub.f32 1.0, %v23
    %v41 = vsub.f32 1.0, %v24
    %v42 = vsub.f32 1.0, %v25
    %v43 = vsub.f32 1.0, %v26
    %v44 = vmul.f32 %v40, %v40
    %v45 = vmul.f32 %v41, %v41
    %v46 = vmul.f32 %v42, %v42
    %v47 = vmul.f32 %v43, %v43
    %v48 = vmul.f32 %v36, %v36
    %v49 = vmul.f32 %v37, %v37
    %v50 = vmul.f32 %v38, %v38
    %v51 = vmul.f32 %v39, %v39
    %v52 = vmul.f32 %v48, 100.0
    %v53 = vmul.f32 %v49, 100.0
    %v54 = vmul.f32 %v50, 100.0
    %v55 = vmul.f32 %v51, 100.0
    %v56 = vadd.f32 %v44, %v52
    %v57 = vadd.f32 %v45, %v53
    %v58 = vadd.f32 %v46, %v54
    %v59 = vadd.f32 %v47, %v55
    %60 = vst [vmem:[#allocation5] sm:$0xff] %v56
    %61 = vst [vmem:[#allocation5 + $0x8] sm:$0xff] %v57
    %62 = vst [vmem:[#allocation5 + $0x10] sm:$0xff] %v58
    %63 = vst [vmem:[#allocation5 + $0x18] sm:$0xff] %v59
    // Predicated region
    $region10: #{tpu_custom_call.1} parent=1 // pred_check
      _
    $region11: #{tpu_custom_call.1} parent=1 // pred_check_branch
      %65 = sbr.rel (0) target = $region13
    $region12: #{tpu_custom_call.1} parent=1 // pred_region
      %s67 = ssub.s32 512, 512
      %68 = vsyncadd [#allocation4], %s67
      %s70 = sshll.u32 [#allocation5], 4
      %s71 = int_to_ptr.vmem [resolvable:$true] %s70
      %73 = dma.vmem_to_hbm [thread:$0]  %s71, 512, %s1, [#allocation4]
    $region13: #{tpu_custom_call.1} parent=1 // pred_fallthru
      _
    // Predicated region
    $region14: #{tpu_custom_call.1} parent=1 // pred_check
      _
    $region15: #{tpu_custom_call.1} parent=1 // pred_check_branch
      %75 = sbr.rel (0) target = $region17
    $region16: #{tpu_custom_call.1} parent=1 // pred_region
      %76 = dma.done [#allocation4], 512
    $region17: #{tpu_custom_call.1} parent=1 // pred_fallthru
      _
    %77 = vsyncpa [#allocation3], 1
    %78 = vsyncpa [#allocation4], 1

</llo_original>
